<compile_context>
chip_gen: v7x
topology: tpu7x:2x2x1
jax: 0.10.0
libtpu: 0.0.40
codegen_flags: <defaults>
</compile_context>

<pallas_src>
import jax
import jax.numpy as jnp
from jax.experimental import pallas as pl
from jax.experimental.pallas import tpu as pltpu

# Fixed (non-trainable) taps from the module's __init__ (cross-correlation order).
W1_TAPS = (-0.2, -0.1, 0.0, 0.1, 0.2)   # fixed_1, kernel (5, 1) along H
W2_TAPS = (-0.5, 0.0, 0.5)              # fixed_2, kernel (3, 1) along H


def _vmem_capacity_bytes():
    """Physical VMEM of the current TPU generation (fallback: v7x's 64 MiB)."""
    try:
        cap = getattr(pltpu.get_tpu_info(), "vmem_capacity_bytes", None)
        if cap:
            return int(cap)
    except Exception:
        pass
    return 64 * 1024 * 1024


def _pick_tile(dim, cap, align=1):
    """Largest divisor of `dim` that is <= cap and a multiple of `align`.

    Falls back to the full extent (always a legal Pallas block) if no such
    divisor exists, so the (8, 128) last-two-dims rule is never violated.
    """
    cap = max(1, int(cap))
    if dim <= cap:
        return dim
    for d in range(cap, 0, -1):
        if dim % d == 0 and d % align == 0:
            return d
    return dim


def _plan_tiles(N, C, H, W, itemsize, budget):
    """Pick (tc, tw) so the pipelined per-step working set stays inside `budget`."""
    def per_channel_bytes(tw):
        return (
            2 * (1 + 3) * H * tw * itemsize   # double-buffered input + 3x output block
            + (H + 4) * tw * 4                # f32 zero-padded stencil value
            + 8 * H * tw * 4                  # f32 stencil temporaries (headroom)
        )

    # Prefer keeping W whole (maximally contiguous HBM runs for the input block
    # and all three output slabs); split it only if even one channel would blow
    # the budget, and then only into multiple-of-128 lane-dense tiles.
    tw = W
    if per_channel_bytes(tw) > budget:
        cap_lanes = max(128, (budget // max(1, per_channel_bytes(1))) // 128 * 128)
        tw = _pick_tile(W, cap_lanes, align=128)

    tc = _pick_tile(C, budget // max(1, per_channel_bytes(tw)))

    # v7x megacore: make sure the parallel grid decomposes into >= 2 blocks so
    # both TensorCores (and the full HBM bandwidth) are used.
    if N * (C // tc) * (W // tw) < 2 and tc > 1:
        tc = _pick_tile(C, max(1, tc // 2))
    return tc, tw


def diflayer2_kernel(x_ref, o_ref):
    """One (1, tc, H, tw) input block -> one (1, 3, tc, H, tw) output block."""
    _, tc, H, tw = x_ref.shape
    x = x_ref[0, :, :, :]                       # (tc, H, tw), input dtype
    xf = x.astype(jnp.float32)                  # stencil math in f32

    # Zero 'same' padding along H as an in-register value; shifted taps are
    # then plain static window slices (no scratch store/reload round-trip).
    zhalo = jnp.zeros((tc, 2, tw), jnp.float32)
    xpad = jnp.concatenate([zhalo, xf, zhalo], axis=1)      # (tc, H+4, tw)

    # Shared central differences.
    d1 = xpad[:, 3:H + 3, :] - xpad[:, 1:H + 1, :]          # x[h+1] - x[h-1]
    d2 = xpad[:, 4:H + 4, :] - xpad[:, 0:H, :]              # x[h+2] - x[h-2]

    # fixed_1 (5-tap): -0.2 x[h-2] - 0.1 x[h-1] + 0.1 x[h+1] + 0.2 x[h+2]
    # fixed_2 (3-tap): -0.5 x[h-1] + 0.5 x[h+1]
    o_ref[0, 0, :, :, :] = x                                   # identity channels
    o_ref[0, 1, :, :, :] = (0.1 * d1 + 0.2 * d2).astype(o_ref.dtype)
    o_ref[0, 2, :, :, :] = (0.5 * d1).astype(o_ref.dtype)


def diflayer2(x):
    N, C, H, W = x.shape
    itemsize = x.dtype.itemsize

    # Generation-aware VMEM plan: scoped limit at 3/4 of physical VMEM, and the
    # per-step (double-buffered) working set targeted at half of that limit.
    #   v5e/v6e (128 MiB): limit 96 MiB, working-set target 48 MiB
    #   v7x      (64 MiB): limit 48 MiB, working-set target 24 MiB
    vmem_cap = _vmem_capacity_bytes()
    vmem_limit = (vmem_cap * 3) // 4
    budget = vmem_limit // 2

    tc, tw = _plan_tiles(N, C, H, W, itemsize, budget)

    out5 = pl.pallas_call(
        diflayer2_kernel,
        out_shape=jax.ShapeDtypeStruct((N, 3, C, H, W), x.dtype),
        grid=(N, C // tc, W // tw),
        in_specs=[pl.BlockSpec((1, tc, H, tw), lambda n, c, w: (n, c, 0, w))],
        out_specs=pl.BlockSpec((1, 3, tc, H, tw),
                               lambda n, c, w: (n, 0, c, 0, w)),
        compiler_params=pltpu.CompilerParams(
            dimension_semantics=("parallel", "parallel", "parallel"),
            vmem_limit_bytes=vmem_limit,
        ),
    )(x)
    # (N, 3, C, H, W) -> (N, 3C, H, W): metadata-only reshape that realizes
    # torch.cat([x, xd1, xd2], dim=1).
    return out5.reshape(N, 3 * C, H, W)


def _reference(x):
    """Independent reference: XLA grouped convolutions mirroring the PyTorch module."""
    N, C, H, W = x.shape
    w1 = jnp.zeros((C, 1, 5, 1), jnp.float32).at[:, 0, :, 0].set(
        jnp.asarray(W1_TAPS, jnp.float32))
    w2 = jnp.zeros((C, 1, 3, 1), jnp.float32).at[:, 0, :, 0].set(
        jnp.asarray(W2_TAPS, jnp.float32))
    dn = ("NCHW", "OIHW", "NCHW")
    xd1 = jax.lax.conv_general_dilated(
        x, w1, window_strides=(1, 1), padding="SAME",
        dimension_numbers=dn, feature_group_count=C)
    xd2 = jax.lax.conv_general_dilated(
        x, w2, window_strides=(1, 1), padding="SAME",
        dimension_numbers=dn, feature_group_count=C)
    return jnp.concatenate([x, xd1, xd2], axis=1)


if __name__ == "__main__":
    key = jax.random.PRNGKey(0)
    for shape in [(2, 4, 16, 16), (1, 3, 24, 128)]:
        key, sub = jax.random.split(key)
        x = jax.random.normal(sub, shape, dtype=jnp.float32)

        out = jax.block_until_ready(diflayer2(x))

        N, C, H, W = shape
        assert out.shape == (N, 3 * C, H, W), out.shape
        assert jnp.array_equal(out[:, :C], x)            # identity channels bit-exact
        ref = _reference(x)
        err = float(jnp.max(jnp.abs(out - ref)))
        assert err < 1e-5, f"max abs err {err} for shape {shape}"
    print("KERNEL_OK")
</pallas_src>

<mosaic_0001>
module attributes {stable_mosaic.version = 11 : i64} {
  func.func @diflayer2_kernel(%arg0: i32, %arg1: i32, %arg2: i32, %arg3: memref<1x4x16x16xf32, #tpu.memory_space<vmem>>, %arg4: memref<1x3x4x16x16xf32, #tpu.memory_space<vmem>>) attributes {dimension_semantics = [#tpu.dimension_semantics<parallel>, #tpu.dimension_semantics<parallel>, #tpu.dimension_semantics<parallel>], iteration_bounds = array<i64: 2, 1, 1>, scalar_prefetch = 0 : i64, scratch_operands = 0 : i64, tpu.core_type = #tpu.core_type<tc>, window_params = [{transform_indices = @transform_0, window_bounds = array<i64: 1, 4, 16, 16>}, {transform_indices = @transform_1, window_bounds = array<i64: 1, 3, 4, 16, 16>}]} {
    %c0 = arith.constant 0 : index
    %c0_0 = arith.constant 0 : index
    %c0_1 = arith.constant 0 : index
    %c0_2 = arith.constant 0 : index
    %0 = vector.load %arg3[%c0, %c0_0, %c0_1, %c0_2] : memref<1x4x16x16xf32, #tpu.memory_space<vmem>>, vector<1x4x16x16xf32>
    %1 = vector.shape_cast %0 : vector<1x4x16x16xf32> to vector<4x16x16xf32>
    %cst = arith.constant 0.000000e+00 : f32
    %2 = vector.broadcast %cst : f32 to vector<4x2x16xf32>
    %3 = tpu.concatenate %2, %1, %2 in 1 : vector<4x2x16xf32>, vector<4x16x16xf32>, vector<4x2x16xf32> -> vector<4x20x16xf32>
    %4 = vector.extract_strided_slice %3 {offsets = [0, 3, 0], sizes = [4, 16, 16], strides = [1, 1, 1]} : vector<4x20x16xf32> to vector<4x16x16xf32>
    %5 = vector.extract_strided_slice %3 {offsets = [0, 1, 0], sizes = [4, 16, 16], strides = [1, 1, 1]} : vector<4x20x16xf32> to vector<4x16x16xf32>
    %6 = arith.subf %4, %5 : vector<4x16x16xf32>
    %7 = vector.extract_strided_slice %3 {offsets = [0, 4, 0], sizes = [4, 16, 16], strides = [1, 1, 1]} : vector<4x20x16xf32> to vector<4x16x16xf32>
    %8 = vector.extract_strided_slice %3 {offsets = [0, 0, 0], sizes = [4, 16, 16], strides = [1, 1, 1]} : vector<4x20x16xf32> to vector<4x16x16xf32>
    %9 = arith.subf %7, %8 : vector<4x16x16xf32>
    %c0_3 = arith.constant 0 : index
    %c0_4 = arith.constant 0 : index
    %c0_5 = arith.constant 0 : index
    %c0_6 = arith.constant 0 : index
    %c0_7 = arith.constant 0 : index
    %10 = vector.load %arg4[%c0_3, %c0_4, %c0_5, %c0_6, %c0_7] : memref<1x3x4x16x16xf32, #tpu.memory_space<vmem>>, vector<1x1x4x16x16xf32>
    %11 = vector.shape_cast %10 : vector<1x1x4x16x16xf32> to vector<4x16x16xf32>
    %12 = vector.shape_cast %1 : vector<4x16x16xf32> to vector<1x1x4x16x16xf32>
    tpu.vector_store %arg4[%c0_3, %c0_4, %c0_5, %c0_6, %c0_7], %12 {strides = array<i32>} : memref<1x3x4x16x16xf32, #tpu.memory_space<vmem>>, vector<1x1x4x16x16xf32>,
    %cst_8 = arith.constant 1.000000e-01 : f32
    %13 = vector.broadcast %cst_8 : f32 to vector<4x16x16xf32>
    %14 = arith.mulf %13, %6 : vector<4x16x16xf32>
    %cst_9 = arith.constant 2.000000e-01 : f32
    %15 = vector.broadcast %cst_9 : f32 to vector<4x16x16xf32>
    %16 = arith.mulf %15, %9 : vector<4x16x16xf32>
    %17 = arith.addf %14, %16 : vector<4x16x16xf32>
    %c0_10 = arith.constant 0 : index
    %c1 = arith.constant 1 : index
    %c0_11 = arith.constant 0 : index
    %c0_12 = arith.constant 0 : index
    %c0_13 = arith.constant 0 : index
    %18 = vector.load %arg4[%c0_10, %c1, %c0_11, %c0_12, %c0_13] : memref<1x3x4x16x16xf32, #tpu.memory_space<vmem>>, vector<1x1x4x16x16xf32>
    %19 = vector.shape_cast %18 : vector<1x1x4x16x16xf32> to vector<4x16x16xf32>
    %20 = vector.shape_cast %17 : vector<4x16x16xf32> to vector<1x1x4x16x16xf32>
    tpu.vector_store %arg4[%c0_10, %c1, %c0_11, %c0_12, %c0_13], %20 {strides = array<i32>} : memref<1x3x4x16x16xf32, #tpu.memory_space<vmem>>, vector<1x1x4x16x16xf32>,
    %cst_14 = arith.constant 5.000000e-01 : f32
    %21 = vector.broadcast %cst_14 : f32 to vector<4x16x16xf32>
    %22 = arith.mulf %21, %6 : vector<4x16x16xf32>
    %c0_15 = arith.constant 0 : index
    %c2 = arith.constant 2 : index
    %c0_16 = arith.constant 0 : index
    %c0_17 = arith.constant 0 : index
    %c0_18 = arith.constant 0 : index
    %23 = vector.load %arg4[%c0_15, %c2, %c0_16, %c0_17, %c0_18] : memref<1x3x4x16x16xf32, #tpu.memory_space<vmem>>, vector<1x1x4x16x16xf32>
    %24 = vector.shape_cast %23 : vector<1x1x4x16x16xf32> to vector<4x16x16xf32>
    %25 = vector.shape_cast %22 : vector<4x16x16xf32> to vector<1x1x4x16x16xf32>
    tpu.vector_store %arg4[%c0_15, %c2, %c0_16, %c0_17, %c0_18], %25 {strides = array<i32>} : memref<1x3x4x16x16xf32, #tpu.memory_space<vmem>>, vector<1x1x4x16x16xf32>,
    return
  }
  func.func @transform_0(%arg0: i32, %arg1: i32, %arg2: i32) -> (i32, i32, i32, i32) {
    %c0_i32 = arith.constant 0 : i32
    %c0_i32_0 = arith.constant 0 : i32
    return %arg0, %arg1, %c0_i32, %arg2 : i32, i32, i32, i32
  }
  func.func @transform_1(%arg0: i32, %arg1: i32, %arg2: i32) -> (i32, i32, i32, i32, i32) {
    %c0_i32 = arith.constant 0 : i32
    %c0_i32_0 = arith.constant 0 : i32
    %c0_i32_1 = arith.constant 0 : i32
    return %arg0, %c0_i32, %arg1, %c0_i32_0, %arg2 : i32, i32, i32, i32, i32
  }
}

</mosaic_0001>

<llo_original>
// kernel: tpu_custom_call.1
$region0: #{tpu_custom_call.1}
  #allocation0 [shape = 'u32[]', space=smem, size = 0x4, offset = 0x4, fixed_abs, tag = 'smem constant byte address 0x4 - core index']
  #allocation1 [shape = 'u32[144,128]{1,0:T(1,128)}', space=vmem, size = 0x12000, scoped, tag = 'internal scratch']
  %s0 = inlined_call_operand.hbm [shape: f32[2,4,16,16], index: 0, kind: input, shape index: {}]
  %s1 = inlined_call_operand.hbm [shape: f32[2,3,4,16,16], index: 1, kind: output, shape index: {}]
  %s2 = sld [smem:[#allocation0]]
  $region41: #{tpu_custom_call.1} parent=0
    _
  %s4 = ssub.s32 1, %s2
  %s5 = scalar_select 0, %s4, %s2
  $region1: #{tpu_custom_call.1} parent=0
    #allocation2 [shape = 'u8[65536]{0}', space=vmem, size = 0x10000, scoped, tag = 'input window, operand 0']
    #allocation3 [shape = 's32[2]{0}', space=sflag, size = 0x8, scoped, tag = 'scoped memory for tpu_custom_call.1']
    #allocation4 [shape = 's32[2]{0}', space=sflag, size = 0x8, scoped, tag = 'scoped memory for tpu_custom_call.1']
    #allocation5 [shape = 'u8[196608]{0}', space=vmem, size = 0x30000, scoped, tag = 'output window, operand 0']
    %6 = vsyncpa [#allocation3], 0
    %s7 = scalar_lea.sflag [#allocation3], 1
    %8 = vsyncpa %s7, 0
    %9 = vsyncpa [#allocation4], 0
    %s10 = scalar_lea.sflag [#allocation4], 1
    %11 = vsyncpa %s10, 0
    loop: start=0, step=1, limit=4
    $region2: #{tpu_custom_call.1} parent=1 // loop_pre_header
      _
    $region3: #{tpu_custom_call.1} parent=1 // loop_header
      %s13 = sphi 0, %s17
      %p14 = scmp.ge.s32.totalorder %s13, 4
      %s20 = sphi 0, %s39
      %s21 = sphi 0, %s35
      %s22 = sphi 0, %s31
      %s23 = sphi 0, %s20
      %s24 = sphi 0, %s21
      %s25 = sphi 0, %s22
      %s26 = sphi 0, %s23
      %s27 = sphi 0, %s24
      %s28 = sphi 0, %s25
      %s46 = sphi 0, %s48
      %s49 = sphi 0, %s46
      %s50 = sphi 0, %s49
      %s66 = sphi 0, %s50
      %s76 = sphi 0, %s78
      %s79 = sphi 0, %s76
      %s80 = sphi 0, %s79
      %s96 = sphi 0, %s80
    $region4: #{tpu_custom_call.1} parent=1 // loop_header_branch
      %16 = sbr.rel (%p14) target = $region8
    $region5: #{tpu_custom_call.1} parent=1 // loop_body
      %s18 = ssub.s32 %s13, 1
      %s19 = ssub.s32 %s13, 2
      %s29 = sadd.s32 1, %s22
      %p30 = scmp.ge.s32.totalorder %s29, 1
      %s31 = scalar_select %p30, 0, %s29
      %s32 = sadd.s32 1, %s21
      %s33 = scalar_select %p30, %s32, %s21
      %p34 = scmp.ge.s32.totalorder %s33, 1
      %s35 = scalar_select %p34, 0, %s33
      %s36 = sadd.s32 1, %s20
      %s37 = scalar_select %p34, %s36, %s20
      %p38 = scmp.ge.s32.totalorder %s37, 2
      %s39 = scalar_select %p38, 0, %s37
      %s40 = ssub.s32 %s20, %s39
      %s41 = ssub.s32 %s21, %s35
      %s42 = sor.u32 %s40, %s41
      %s43 = ssub.s32 %s22, %s31
      %s44 = sor.u32 %s42, %s43
      %p45 = scmp.eq.s32.totalorder %s44, 0
      %s47 = sadd.s32 %s46, 1
      %s48 = scalar_select %p45, %s46, %s47
      %p51 = pneg %p45
      %p52 = scmp.eq.s32.totalorder %s13, 1
      %p53 = por %p51, %p52
      %p54 = scmp.ne.s32.totalorder %s46, %s49
      %p55 = scmp.eq.s32.totalorder %s13, 0
      %p56 = por %p54, %p55
      %p57 = scmp.ne.s32.totalorder %s46, %s49
      %p58 = scmp.eq.s32.totalorder %s18, 1
      %p59 = por %p57, %p58
      %p60 = scmp.ne.s32.totalorder %s49, %s50
      %p61 = scmp.eq.s32.totalorder %s18, 0
      %p62 = por %p60, %p61
      %p63 = scmp.ne.s32.totalorder %s49, %s50
      %p64 = scmp.eq.s32.totalorder %s19, 1
      %p65 = por %p63, %p64
      %p67 = scmp.ne.s32.totalorder %s50, %s66
      %p68 = scmp.eq.s32.totalorder %s19, 0
      %p69 = por %p67, %p68
      %s70 = ssub.s32 %s20, %s39
      %s71 = ssub.s32 %s21, %s35
      %s72 = sor.u32 %s70, %s71
      %s73 = ssub.s32 %s22, %s31
      %s74 = sor.u32 %s72, %s73
      %p75 = scmp.eq.s32.totalorder %s74, 0
      %s77 = sadd.s32 %s76, 1
      %s78 = scalar_select %p75, %s76, %s77
      %p81 = pneg %p75
      %p82 = scmp.eq.s32.totalorder %s13, 1
      %p83 = por %p81, %p82
      %p84 = scmp.ne.s32.totalorder %s76, %s79
      %p85 = scmp.eq.s32.totalorder %s13, 0
      %p86 = por %p84, %p85
      %p87 = scmp.ne.s32.totalorder %s76, %s79
      %p88 = scmp.eq.s32.totalorder %s18, 1
      %p89 = por %p87, %p88
      %p90 = scmp.ne.s32.totalorder %s79, %s80
      %p91 = scmp.eq.s32.totalorder %s18, 0
      %p92 = por %p90, %p91
      %p93 = scmp.ne.s32.totalorder %s79, %s80
      %p94 = scmp.eq.s32.totalorder %s19, 1
      %p95 = por %p93, %p94
      %p97 = scmp.ne.s32.totalorder %s80, %s96
      %p98 = scmp.eq.s32.totalorder %s19, 0
      %p99 = por %p97, %p98
      %p100 = scmp.le.s32.totalorder 1, %s13
      %p101 = scmp.lt.s32.totalorder %s13, 3
      %p102 = pnand %p100, %p101
      %p103 = pneg %p102
      // Predicated region
      $region9: #{tpu_custom_call.1} parent=5 // pred_check
        _
      $region10: #{tpu_custom_call.1} parent=5 // pred_check_branch
        %105 = sbr.rel (%p102) target = $region12
      $region11: #{tpu_custom_call.1} parent=5 // pred_region
        %s106 = ssub.s32 %s13, 1
      $region12: #{tpu_custom_call.1} parent=5 // pred_fallthru
        _
      %p107 = scmp.lt.s32.totalorder %s13, 2
      // Predicated region
      $region13: #{tpu_custom_call.1} parent=5 // pred_check
        %p108 = pneg %p107
      $region14: #{tpu_custom_call.1} parent=5 // pred_check_branch
        %110 = sbr.rel (%p108) target = $region16
      $region15: #{tpu_custom_call.1} parent=5 // pred_region
        // Predicated region
        $region17: #{tpu_custom_call.1} parent=15 // pred_check
          %p111 = pneg %p56
        $region18: #{tpu_custom_call.1} parent=15 // pred_check_branch
          %113 = sbr.rel (%p111) target = $region20
        $region19: #{tpu_custom_call.1} parent=15 // pred_region
          %s114 = sand.u32 %s46, 1
          %s115 = scalar_lea.sflag [#allocation3], %s114
          %s116 = sand.u32 %s46, 1
          %s117 = smul.addr %s116, 64
          %s118 = scalar_lea.vmem [#allocation2], %s117
          %s119 = smul.u32 4, %s21
          %s121 = ssub.s32 1024, 1024
          %122 = vsyncadd %s115, %s121
          %s123 = smul.addr %s119, 2
          %s124 = sadd.s32 %s22, %s123
          %s125 = smul.addr %s20, 8
          %s126 = sadd.s32 %s124, %s125
          %s127 = smul.addr %s126, 128
          %s128 = scalar_lea.hbm %s0, %s127
          %s129 = sshll.u32 %s118, 4
          %s130 = int_to_ptr.vmem [resolvable:$true] %s129
          %135 = dma.hbm_to_vmem [thread:$0]  %s128, 1024, %s130, %s115, 128, 128, 8
        $region20: #{tpu_custom_call.1} parent=15 // pred_fallthru
          _
      $region16: #{tpu_custom_call.1} parent=5 // pred_fallthru
        _
      %p136 = scmp.le.s32.totalorder 1, %s13
      %p137 = scmp.lt.s32.totalorder %s13, 3
      %p138 = pnand %p136, %p137
      %p139 = pneg %p138
      // Predicated region
      $region21: #{tpu_custom_call.1} parent=5 // pred_check
        _
      $region22: #{tpu_custom_call.1} parent=5 // pred_check_branch
        %141 = sbr.rel (%p138) target = $region24
      $region23: #{tpu_custom_call.1} parent=5 // pred_region
        %s142 = ssub.s32 %s13, 1
        %s143 = sand.u32 %s49, 1
        %s144 = scalar_lea.sflag [#allocation3], %s143
        %s145 = sand.u32 %s49, 1
        %s146 = smul.addr %s145, 64
        %s147 = scalar_lea.vmem [#allocation2], %s146
        // Predicated region
        $region25: #{tpu_custom_call.1} parent=23 // pred_check
          %p148 = pneg %p62
        $region26: #{tpu_custom_call.1} parent=23 // pred_check_branch
          %150 = sbr.rel (%p148) target = $region28
        $region27: #{tpu_custom_call.1} parent=23 // pred_region
          %151 = dma.done %s144, 1024
        $region28: #{tpu_custom_call.1} parent=23 // pred_fallthru
          _
        %s152 = sand.u32 %s49, 1
        %s153 = scalar_lea.sflag [#allocation3], %s152
        %s154 = sand.u32 %s49, 1
        %s155 = smul.addr %s154, 64
        %s156 = scalar_lea.vmem [#allocation2], %s155
        %p157 = pneg %p62
        %p158 = pneg %p59
        %p159 = pneg %p92
        %p160 = pneg %p89
        %s161 = sand.u32 %s79, 1
        %s162 = scalar_lea.sflag [#allocation4], %s161
        %s163 = sand.u32 %s79, 1
        %s164 = smul.addr %s163, 192
        %s165 = scalar_lea.vmem [#allocation5], %s164
        %s166 = smul.u32 4, %s24
        %s167 = smul.u32 4, %s24
        %v168 = vld [vmem:[%s147] sm:$0xff]
        %v169 = vld [vmem:[%s147 + $0x8] sm:$0xff]
        %v170 = vld [vmem:[%s147 + $0x10] sm:$0xff]
        %v171 = vld [vmem:[%s147 + $0x18] sm:$0xff]
        %v172 = vld [vmem:[%s147 + $0x20] sm:$0xff]
        %v173 = vld [vmem:[%s147 + $0x28] sm:$0xff]
        %v174 = vld [vmem:[%s147 + $0x30] sm:$0xff]
        %v175 = vld [vmem:[%s147 + $0x38] sm:$0xff]
        %vm184 = vcmask 1041408
        %v185 = vrot.slane %v168, 6
        %v186 = vrot.slane %v169, 6
        %v187 = vsel %vm184, %v185, %v186
        %v188 = vrot.slane %v170, 6
        %v189 = vrot.slane %v171, 6
        %v190 = vsel %vm184, %v188, %v189
        %v191 = vrot.slane %v172, 6
        %v192 = vrot.slane %v173, 6
        %v193 = vsel %vm184, %v191, %v192
        %v194 = vrot.slane %v174, 6
        %v195 = vrot.slane %v175, 6
        %v196 = vsel %vm184, %v194, %v195
        %v209 = vsel %vm184, 0.0, %v185
        %v210 = vsel %vm184, 0.0, %v188
        %v211 = vsel %vm184, 0.0, %v191
        %v212 = vsel %vm184, 0.0, %v194
        %v213 = vsel %vm184, %v186, 0.0
        %v214 = vsel %vm184, %v189, 0.0
        %v215 = vsel %vm184, %v192, 0.0
        %v216 = vsel %vm184, %v195, 0.0
        %v225 = vrot.slane %v209, 6
        %v226 = vrot.slane %v187, 6
        %v227 = vsel %vm184, %v225, %v226
        %v228 = vrot.slane %v213, 6
        %v229 = vsel %vm184, %v226, %v228
        %v230 = vrot.slane %v210, 6
        %v231 = vrot.slane %v190, 6
        %v232 = vsel %vm184, %v230, %v231
        %v233 = vrot.slane %v214, 6
        %v234 = vsel %vm184, %v231, %v233
        %v235 = vrot.slane %v211, 6
        %v236 = vrot.slane %v193, 6
        %v237 = vsel %vm184, %v235, %v236
        %v238 = vrot.slane %v215, 6
        %v239 = vsel %vm184, %v236, %v238
        %v240 = vrot.slane %v212, 6
        %v241 = vrot.slane %v196, 6
        %v242 = vsel %vm184, %v240, %v241
        %v243 = vrot.slane %v216, 6
        %v244 = vsel %vm184, %v241, %v243
        %v257 = vsub.f32 %v209, %v225
        %v258 = vsub.f32 %v187, %v227
        %v259 = vsub.f32 %v213, %v229
        %v260 = vsub.f32 %v210, %v230
        %v261 = vsub.f32 %v190, %v232
        %v262 = vsub.f32 %v214, %v234
        %v263 = vsub.f32 %v211, %v235
        %v264 = vsub.f32 %v193, %v237
        %v265 = vsub.f32 %v215, %v239
        %v266 = vsub.f32 %v212, %v240
        %v267 = vsub.f32 %v196, %v242
        %v268 = vsub.f32 %v216, %v244
        %vm269 = vcmask 1043456
        %v270 = vrot.slane %v209, 4
        %v271 = vrot.slane %v187, 4
        %v272 = vsel %vm269, %v270, %v271
        %v273 = vrot.slane %v210, 4
        %v274 = vrot.slane %v190, 4
        %v275 = vsel %vm269, %v273, %v274
        %v276 = vrot.slane %v211, 4
        %v277 = vrot.slane %v193, 4
        %v278 = vsel %vm269, %v276, %v277
        %v279 = vrot.slane %v212, 4
        %v280 = vrot.slane %v196, 4
        %v281 = vsel %vm269, %v279, %v280
        %v294 = vsub.f32 %v209, %v270
        %v295 = vsub.f32 %v187, %v272
        %v296 = vsub.f32 %v213, %v271
        %v297 = vsub.f32 %v210, %v273
        %v298 = vsub.f32 %v190, %v275
        %v299 = vsub.f32 %v214, %v274
        %v300 = vsub.f32 %v211, %v276
        %v301 = vsub.f32 %v193, %v278
        %v302 = vsub.f32 %v215, %v277
        %v303 = vsub.f32 %v212, %v279
        %v304 = vsub.f32 %v196, %v281
        %v305 = vsub.f32 %v216, %v280
        %vm306 = vcmask 130048
        %307 = vst.msk [vmem:[%s165] sm:$0xff] %vm306, %v168
        %308 = vst.msk [vmem:[%s165 + $0x8] sm:$0xff] %vm306, %v169
        %309 = vst.msk [vmem:[%s165 + $0x10] sm:$0xff] %vm306, %v170
        %310 = vst.msk [vmem:[%s165 + $0x18] sm:$0xff] %vm306, %v171
        %311 = vst.msk [vmem:[%s165 + $0x20] sm:$0xff] %vm306, %v172
        %312 = vst.msk [vmem:[%s165 + $0x28] sm:$0xff] %vm306, %v173
        %313 = vst.msk [vmem:[%s165 + $0x30] sm:$0xff] %vm306, %v174
        %314 = vst.msk [vmem:[%s165 + $0x38] sm:$0xff] %vm306, %v175
        %v315 = vmul.f32 %v257, 0.1
        %v316 = vmul.f32 %v258, 0.1
        %v317 = vmul.f32 %v259, 0.1
        %v318 = vmul.f32 %v260, 0.1
        %v319 = vmul.f32 %v261, 0.1
        %v320 = vmul.f32 %v262, 0.1
        %v321 = vmul.f32 %v263, 0.1
        %v322 = vmul.f32 %v264, 0.1
        %v323 = vmul.f32 %v265, 0.1
        %v324 = vmul.f32 %v266, 0.1
        %v325 = vmul.f32 %v267, 0.1
        %v326 = vmul.f32 %v268, 0.1
        %v327 = vmul.f32 %v294, 0.2
        %v328 = vmul.f32 %v295, 0.2
        %v329 = vmul.f32 %v296, 0.2
        %v330 = vmul.f32 %v297, 0.2
        %v331 = vmul.f32 %v298, 0.2
        %v332 = vmul.f32 %v299, 0.2
        %v333 = vmul.f32 %v300, 0.2
        %v334 = vmul.f32 %v301, 0.2
        %v335 = vmul.f32 %v302, 0.2
        %v336 = vmul.f32 %v303, 0.2
        %v337 = vmul.f32 %v304, 0.2
        %v338 = vmul.f32 %v305, 0.2
        %vm351 = vcmask 1046528
        %v352 = vrot.slane %v327, 1
        %v353 = vrot.slane %v328, 1
        %v354 = vsel %vm351, %v352, %v353
        %v355 = vrot.slane %v329, 1
        %v356 = vsel %vm351, %v353, %v355
        %v357 = vrot.slane %v330, 1
        %v358 = vrot.slane %v331, 1
        %v359 = vsel %vm351, %v357, %v358
        %v360 = vrot.slane %v332, 1
        %v361 = vsel %vm351, %v358, %v360
        %v362 = vrot.slane %v333, 1
        %v363 = vrot.slane %v334, 1
        %v364 = vsel %vm351, %v362, %v363
        %v365 = vrot.slane %v335, 1
        %v366 = vsel %vm351, %v363, %v365
        %v367 = vrot.slane %v336, 1
        %v368 = vrot.slane %v337, 1
        %v369 = vsel %vm351, %v367, %v368
        %v370 = vrot.slane %v338, 1
        %v371 = vsel %vm351, %v368, %v370
        %v384 = vadd.f32 %v315, %v354
        %v385 = vadd.f32 %v316, %v356
        %v386 = vadd.f32 %v317, %v355
        %v387 = vadd.f32 %v318, %v359
        %v388 = vadd.f32 %v319, %v361
        %v389 = vadd.f32 %v320, %v360
        %v390 = vadd.f32 %v321, %v364
        %v391 = vadd.f32 %v322, %v366
        %v392 = vadd.f32 %v323, %v365
        %v393 = vadd.f32 %v324, %v369
        %v394 = vadd.f32 %v325, %v371
        %v395 = vadd.f32 %v326, %v370
        %s396 = scalar_lea.vmem %s165, 64 [#allocation5]
        %vm397 = vcmask 130051
        %398 = vst.msk [vmem:[%s396 - $0x3] sm:$0xf8] %vm397, %v384
        %399 = vst.msk [vmem:[%s396 + $0x5] sm:$0xff] %vm306, %v385
        %vm400 = vcmask 124928
        %401 = vst.msk [vmem:[%s396 + $0xd] sm:$0x7] %vm400, %v386
        %402 = vst.msk [vmem:[%s396 + $0xd] sm:$0xf8] %vm397, %v387
        %403 = vst.msk [vmem:[%s396 + $0x15] sm:$0xff] %vm306, %v388
        %404 = vst.msk [vmem:[%s396 + $0x1d] sm:$0x7] %vm400, %v389
        %405 = vst.msk [vmem:[%s396 + $0x1d] sm:$0xf8] %vm397, %v390
        %406 = vst.msk [vmem:[%s396 + $0x25] sm:$0xff] %vm306, %v391
        %407 = vst.msk [vmem:[%s396 + $0x2d] sm:$0x7] %vm400, %v392
        %408 = vst.msk [vmem:[%s396 + $0x2d] sm:$0xf8] %vm397, %v393
        %409 = vst.msk [vmem:[%s396 + $0x35] sm:$0xff] %vm306, %v394
        %410 = vst.msk [vmem:[%s396 + $0x3d] sm:$0x7] %vm400, %v395
        %v411 = vmul.f32 %v257, 0.5
        %v412 = vmul.f32 %v258, 0.5
        %v413 = vmul.f32 %v259, 0.5
        %v414 = vmul.f32 %v260, 0.5
        %v415 = vmul.f32 %v261, 0.5
        %v416 = vmul.f32 %v262, 0.5
        %v417 = vmul.f32 %v263, 0.5
        %v418 = vmul.f32 %v264, 0.5
        %v419 = vmul.f32 %v265, 0.5
        %v420 = vmul.f32 %v266, 0.5
        %v421 = vmul.f32 %v267, 0.5
        %v422 = vmul.f32 %v268, 0.5
        %s423 = scalar_lea.vmem %s165, 128 [#allocation5]
        %424 = vst.msk [vmem:[%s423 - $0x3] sm:$0xf8] %vm397, %v411
        %425 = vst.msk [vmem:[%s423 + $0x5] sm:$0xff] %vm306, %v412
        %426 = vst.msk [vmem:[%s423 + $0xd] sm:$0x7] %vm400, %v413
        %427 = vst.msk [vmem:[%s423 + $0xd] sm:$0xf8] %vm397, %v414
        %428 = vst.msk [vmem:[%s423 + $0x15] sm:$0xff] %vm306, %v415
        %429 = vst.msk [vmem:[%s423 + $0x1d] sm:$0x7] %vm400, %v416
        %430 = vst.msk [vmem:[%s423 + $0x1d] sm:$0xf8] %vm397, %v417
        %431 = vst.msk [vmem:[%s423 + $0x25] sm:$0xff] %vm306, %v418
        %432 = vst.msk [vmem:[%s423 + $0x2d] sm:$0x7] %vm400, %v419
        %433 = vst.msk [vmem:[%s423 + $0x2d] sm:$0xf8] %vm397, %v420
        %434 = vst.msk [vmem:[%s423 + $0x35] sm:$0xff] %vm306, %v421
        %435 = vst.msk [vmem:[%s423 + $0x3d] sm:$0x7] %vm400, %v422
        %s436 = sand.u32 %s79, 1
        %s437 = scalar_lea.sflag [#allocation4], %s436
        %s438 = sand.u32 %s79, 1
        %s439 = smul.addr %s438, 192
        %s440 = scalar_lea.vmem [#allocation5], %s439
        // Predicated region
        $region29: #{tpu_custom_call.1} parent=23 // pred_check
          %p441 = pneg %p89
        $region30: #{tpu_custom_call.1} parent=23 // pred_check_branch
          %443 = sbr.rel (%p441) target = $region32
        $region31: #{tpu_custom_call.1} parent=23 // pred_region
          %s444 = smul.u32 4, %s24
          %s446 = ssub.s32 3072, 3072
          %447 = vsyncadd %s437, %s446
          %s448 = smul.addr %s444, 2
          %s449 = sadd.s32 %s25, %s448
          %s450 = smul.addr %s23, 24
          %s451 = sadd.s32 %s449, %s450
          %s452 = smul.addr %s451, 128
          %s453 = scalar_lea.hbm %s1, %s452
          %s454 = sshll.u32 %s440, 4
          %s455 = int_to_ptr.vmem [resolvable:$true] %s454
          %460 = dma.vmem_to_hbm [thread:$0]  %s455, 3072, %s453, %s437, 128, 128, 8
        $region32: #{tpu_custom_call.1} parent=23 // pred_fallthru
          _
      $region24: #{tpu_custom_call.1} parent=5 // pred_fallthru
        _
      %p461 = scmp.le.s32.totalorder 2, %s13
      // Predicated region
      $region33: #{tpu_custom_call.1} parent=5 // pred_check
        %p462 = pneg %p461
      $region34: #{tpu_custom_call.1} parent=5 // pred_check_branch
        %464 = sbr.rel (%p462) target = $region36
      $region35: #{tpu_custom_call.1} parent=5 // pred_region
        %s465 = ssub.s32 %s13, 2
        // Predicated region
        $region37: #{tpu_custom_call.1} parent=35 // pred_check
          %p466 = pneg %p95
        $region38: #{tpu_custom_call.1} parent=35 // pred_check_branch
          %468 = sbr.rel (%p466) target = $region40
        $region39: #{tpu_custom_call.1} parent=35 // pred_region
          %s469 = sand.u32 %s80, 1
          %s470 = scalar_lea.sflag [#allocation4], %s469
          %s471 = sand.u32 %s80, 1
          %s472 = smul.addr %s471, 192
          %s473 = scalar_lea.vmem [#allocation5], %s472
          %474 = dma.done %s470, 3072
        $region40: #{tpu_custom_call.1} parent=35 // pred_fallthru
          _
      $region36: #{tpu_custom_call.1} parent=5 // pred_fallthru
        _
    $region6: #{tpu_custom_call.1} parent=1 // loop_footer
      %s17 = sadd.s32 1, %s13
    $region7: #{tpu_custom_call.1} parent=1 // loop_footer_branch
      %12 = sbr.rel target = $region3
    $region8: #{tpu_custom_call.1} parent=1 // loop_exit
      _
    %475 = vsyncpa [#allocation3], 1
    %s476 = scalar_lea.sflag [#allocation3], 1
    %477 = vsyncpa %s476, 1
    %478 = vsyncpa [#allocation4], 1
    %s479 = scalar_lea.sflag [#allocation4], 1
    %480 = vsyncpa %s479, 1

</llo_original>
